<compile_context>
chip_gen: v5e
topology: v5e:2x2
jax: 0.10.0
libtpu: 0.0.40
codegen_flags: <defaults>
</compile_context>

<pallas_src>
import math

import jax
import jax.numpy as jnp
from jax.experimental import pallas as pl
from jax.experimental.pallas import tpu as pltpu

EPSILON = 1e-5
_TILE_BYTES_TARGET = 4 * 1024 * 1024  # ~4 MiB of logits per tile (x2 buffers fits all gens)


def _round_up(x, m):
    return ((x + m - 1) // m) * m


def _make_gdl_kernel(C, S, block_m):
    """Builds a kernel processing one (C, block_m) tile of one batch element."""
    needs_mask = (S % block_m) != 0

    def kernel(logits_ref, labels_ref, pt_ref, p_ref, t_ref):
        i = pl.program_id(1)  # position along the flattened-spatial axis

        logits = logits_ref[...].astype(jnp.float32)   # (C, TM)
        labels = labels_ref[...].astype(jnp.int32)     # (1, TM)

        # Softmax over the class (sublane) axis; one reciprocal per column, then a
        # broadcast multiply instead of C divides per element.
        m = jnp.max(logits, axis=0, keepdims=True)                 # (1, TM)
        e = jnp.exp(logits - m)                                    # (C, TM)
        inv_denom = 1.0 / jnp.sum(e, axis=0, keepdims=True)        # (1, TM)
        probs = e * inv_denom                                      # (C, TM)

        # One-hot encode labels in-register.
        cls_ids = jax.lax.broadcasted_iota(jnp.int32, (C, block_m), 0)
        onehot = (labels == cls_ids).astype(jnp.float32)           # (C, TM)

        if needs_mask:
            # Partial last tile: zero out contributions from out-of-bounds columns.
            # (jnp.where also squashes any NaN/Inf coming from the undefined pad region.)
            col = i * block_m + jax.lax.broadcasted_iota(jnp.int32, (1, block_m), 1)
            valid = col < S
            probs = jnp.where(valid, probs, 0.0)
            onehot = jnp.where(valid, onehot, 0.0)

        pt_part = jnp.sum(probs * onehot, axis=-1, keepdims=True)  # (C, 1)
        p_part = jnp.sum(probs, axis=-1, keepdims=True)            # (C, 1)
        t_part = jnp.sum(onehot, axis=-1, keepdims=True)           # (C, 1)

        # Outputs are indexed only by the batch axis, so they stay resident in VMEM
        # across the inner "arbitrary" axis and act as per-batch accumulators.
        @pl.when(i == 0)
        def _init():
            pt_ref[...] = pt_part
            p_ref[...] = p_part
            t_ref[...] = t_part

        @pl.when(i > 0)
        def _accumulate():
            pt_ref[...] += pt_part
            p_ref[...] += p_part
            t_ref[...] += t_part

    return kernel


def generalized_dice_loss(logits, target, weight=None, epsilon=EPSILON, block_m=None):
    """logits: (N, C, *spatial) float; target: (N, *spatial) integer labels."""
    N, C = logits.shape[0], logits.shape[1]
    S = math.prod(logits.shape[2:]) if logits.ndim > 2 else 1

    # Free reshapes only — no HBM transpose.
    logits_r = logits.reshape(N, C, S)
    if not jnp.issubdtype(target.dtype, jnp.integer):
        target = target.astype(jnp.int32)
    labels_r = target.reshape(N, 1, S)

    # Pick a large lane-dim tile (multiple of 128), capped at the padded volume size.
    if block_m is None:
        target_cols = (_TILE_BYTES_TARGET // (C * logits_r.dtype.itemsize)) // 128 * 128
        block_m = min(_round_up(S, 128), max(128, target_cols))
    block_m = max(128, _round_up(block_m, 128))
    num_blocks = pl.cdiv(S, block_m)

    # VMEM budget: double-buffered logits + labels tiles, plus headroom.  Stays well under
    # the 64 MiB physical VMEM of v7x and below the 128 MiB of v5e/v6e.
    in_bytes = block_m * (C * logits_r.dtype.itemsize + labels_r.dtype.itemsize)
    vmem_limit = int(max(32 << 20, min(2 * in_bytes + (8 << 20), 64 << 20)))

    kernel = _make_gdl_kernel(C, S, block_m)
    out_sds = jax.ShapeDtypeStruct((N, C, 1), jnp.float32)
    out_spec = pl.BlockSpec((pl.Squeezed(), C, 1), lambda n, i: (n, 0, 0))

    pt, p, t = pl.pallas_call(
        kernel,
        out_shape=(out_sds, out_sds, out_sds),
        grid=(N, num_blocks),
        in_specs=[
            pl.BlockSpec((pl.Squeezed(), C, block_m), lambda n, i: (n, 0, i)),
            pl.BlockSpec((pl.Squeezed(), 1, block_m), lambda n, i: (n, 0, i)),
        ],
        out_specs=(out_spec, out_spec, out_spec),
        compiler_params=pltpu.CompilerParams(
            dimension_semantics=("parallel", "arbitrary"),
            vmem_limit_bytes=vmem_limit,
        ),
    )(logits_r, labels_r)

    # Tiny finalize in plain JAX (combines per-batch partials; applies optional weight).
    sum_pt = jnp.sum(pt[..., 0], axis=0)   # (C,)
    sum_p = jnp.sum(p[..., 0], axis=0)     # (C,)
    sum_t = jnp.sum(t[..., 0], axis=0)     # (C,)  == target_sum per class

    class_weights = 1.0 / jnp.maximum(sum_t * sum_t, epsilon)
    intersect = sum_pt * class_weights
    if weight is not None:
        intersect = jnp.asarray(weight, jnp.float32).reshape(-1) * intersect
    intersect = jnp.sum(intersect)
    denominator = jnp.sum((sum_p + sum_t) * class_weights)
    return 1.0 - 2.0 * intersect / jnp.maximum(denominator, epsilon)


def _reference(logits, target, weight=None, epsilon=EPSILON):
    """Pure-JAX reference mirroring the PyTorch module."""
    C = logits.shape[1]
    probs = jax.nn.softmax(logits, axis=1)
    onehot = jax.nn.one_hot(target, C, axis=1, dtype=jnp.float32)
    perm = (1, 0) + tuple(range(2, logits.ndim))
    p_f = jnp.transpose(probs, perm).reshape(C, -1)
    t_f = jnp.transpose(onehot, perm).reshape(C, -1)
    ts = t_f.sum(-1)
    cw = 1.0 / jnp.maximum(ts * ts, epsilon)
    inter = (p_f * t_f).sum(-1) * cw
    if weight is not None:
        inter = jnp.asarray(weight, jnp.float32) * inter
    inter = inter.sum()
    denom = ((p_f + t_f).sum(-1) * cw).sum()
    return 1.0 - 2.0 * inter / jnp.maximum(denom, epsilon)


if __name__ == "__main__":
    # Case 1: batch=2, classes=4, depth=4, H=W=16; weight=None (module default).
    N, C, D, H, W = 2, 4, 4, 16, 16
    key = jax.random.PRNGKey(0)
    k1, k2 = jax.random.split(key)
    logits = jax.random.normal(k1, (N, C, D, H, W), jnp.float32)
    target = jax.random.randint(k2, (N, D, H, W), 0, C, jnp.int32)

    loss = jax.block_until_ready(generalized_dice_loss(logits, target, weight=None))
    ref = jax.block_until_ready(_reference(logits, target))
    assert jnp.allclose(loss, ref, rtol=1e-5, atol=1e-5), (loss, ref)

    # Case 2: uneven spatial size (exercises the masked partial last tile) + class weights.
    N2, C2, D2, H2, W2 = 1, 4, 4, 16, 15   # S = 960, not a multiple of 256
    k3, k4 = jax.random.split(k2)
    logits2 = jax.random.normal(k3, (N2, C2, D2, H2, W2), jnp.float32)
    target2 = jax.random.randint(k4, (N2, D2, H2, W2), 0, C2, jnp.int32)
    w2 = jnp.array([1.0, 2.0, 0.5, 1.5], jnp.float32)

    loss2 = jax.block_until_ready(
        generalized_dice_loss(logits2, target2, weight=w2, block_m=256))
    ref2 = jax.block_until_ready(_reference(logits2, target2, weight=w2))
    assert jnp.allclose(loss2, ref2, rtol=1e-5, atol=1e-5), (loss2, ref2)

    print("KERNEL_OK")
</pallas_src>

<mosaic_0001>
module attributes {stable_mosaic.version = 11 : i64} {
  func.func @kernel(%arg0: i32, %arg1: i32, %arg2: memref<1x4x1024xf32, #tpu.memory_space<vmem>>, %arg3: memref<1x1x1024xi32, #tpu.memory_space<vmem>>, %arg4: memref<1x4x1xf32, #tpu.memory_space<vmem>>, %arg5: memref<1x4x1xf32, #tpu.memory_space<vmem>>, %arg6: memref<1x4x1xf32, #tpu.memory_space<vmem>>) attributes {dimension_semantics = [#tpu.dimension_semantics<parallel>, #tpu.dimension_semantics<arbitrary>], iteration_bounds = array<i64: 2, 1>, scalar_prefetch = 0 : i64, scratch_operands = 0 : i64, tpu.core_type = #tpu.core_type<tc>, window_params = [{transform_indices = @transform_0, window_bounds = array<i64: 1, 4, 1024>}, {transform_indices = @transform_1, window_bounds = array<i64: 1, 1, 1024>}, {transform_indices = @transform_2, window_bounds = array<i64: 1, 4, 1>}, {transform_indices = @transform_3, window_bounds = array<i64: 1, 4, 1>}, {transform_indices = @transform_4, window_bounds = array<i64: 1, 4, 1>}]} {
    %c0 = arith.constant 0 : index
    %c0_0 = arith.constant 0 : index
    %c0_1 = arith.constant 0 : index
    %0 = vector.load %arg2[%c0, %c0_0, %c0_1] : memref<1x4x1024xf32, #tpu.memory_space<vmem>>, vector<1x4x1024xf32>
    %1 = vector.shape_cast %0 : vector<1x4x1024xf32> to vector<4x1024xf32>
    %c0_2 = arith.constant 0 : index
    %c0_3 = arith.constant 0 : index
    %c0_4 = arith.constant 0 : index
    %2 = vector.load %arg3[%c0_2, %c0_3, %c0_4] : memref<1x1x1024xi32, #tpu.memory_space<vmem>>, vector<1x1x1024xi32>
    %3 = vector.shape_cast %2 : vector<1x1x1024xi32> to vector<1x1024xi32>
    %cst = arith.constant dense<0xFF800000> : vector<1024xf32>
    %4 = vector.multi_reduction <maximumf>, %1, %cst [0] : vector<4x1024xf32> to vector<1024xf32>
    %5 = vector.shape_cast %4 : vector<1024xf32> to vector<1x1024xf32>
    %6 = vector.broadcast %5 : vector<1x1024xf32> to vector<4x1024xf32>
    %7 = arith.subf %1, %6 : vector<4x1024xf32>
    %8 = math.exp %7 : vector<4x1024xf32>
    %cst_5 = arith.constant dense<0.000000e+00> : vector<1024xf32>
    %9 = vector.multi_reduction <add>, %8, %cst_5 [0] : vector<4x1024xf32> to vector<1024xf32>
    %10 = vector.shape_cast %9 : vector<1024xf32> to vector<1x1024xf32>
    %cst_6 = arith.constant 1.000000e+00 : f32
    %11 = vector.broadcast %cst_6 : f32 to vector<1x1024xf32>
    %12 = arith.divf %11, %10 : vector<1x1024xf32>
    %13 = vector.broadcast %12 : vector<1x1024xf32> to vector<4x1024xf32>
    %14 = arith.mulf %8, %13 : vector<4x1024xf32>
    %15 = tpu.iota {dimensions = array<i32: 0>} : vector<4x1024xi32>
    %16 = vector.broadcast %3 : vector<1x1024xi32> to vector<4x1024xi32>
    %17 = arith.cmpi eq, %16, %15 : vector<4x1024xi32>
    %18 = arith.extui %17 : vector<4x1024xi1> to vector<4x1024xi32>
    %19 = arith.sitofp %18 : vector<4x1024xi32> to vector<4x1024xf32>
    %20 = arith.mulf %14, %19 : vector<4x1024xf32>
    %cst_7 = arith.constant dense<0.000000e+00> : vector<4xf32>
    %21 = vector.multi_reduction <add>, %20, %cst_7 [1] : vector<4x1024xf32> to vector<4xf32>
    %22 = vector.shape_cast %21 : vector<4xf32> to vector<4x1xf32>
    %cst_8 = arith.constant dense<0.000000e+00> : vector<4xf32>
    %23 = vector.multi_reduction <add>, %14, %cst_8 [1] : vector<4x1024xf32> to vector<4xf32>
    %24 = vector.shape_cast %23 : vector<4xf32> to vector<4x1xf32>
    %cst_9 = arith.constant dense<0.000000e+00> : vector<4xf32>
    %25 = vector.multi_reduction <add>, %19, %cst_9 [1] : vector<4x1024xf32> to vector<4xf32>
    %26 = vector.shape_cast %25 : vector<4xf32> to vector<4x1xf32>
    %c0_i32 = arith.constant 0 : i32
    %27 = arith.cmpi eq, %arg1, %c0_i32 : i32
    %28 = arith.extui %27 : i1 to i32
    %c0_i32_10 = arith.constant 0 : i32
    %29 = arith.cmpi ne, %28, %c0_i32_10 : i32
    scf.if %29 {
      %c0_13 = arith.constant 0 : index
      %c0_14 = arith.constant 0 : index
      %c0_15 = arith.constant 0 : index
      %33 = vector.load %arg4[%c0_13, %c0_14, %c0_15] : memref<1x4x1xf32, #tpu.memory_space<vmem>>, vector<1x4x1xf32>
      %34 = vector.shape_cast %33 : vector<1x4x1xf32> to vector<4x1xf32>
      %35 = vector.shape_cast %22 : vector<4x1xf32> to vector<1x4x1xf32>
      tpu.vector_store %arg4[%c0_13, %c0_14, %c0_15], %35 {strides = array<i32>} : memref<1x4x1xf32, #tpu.memory_space<vmem>>, vector<1x4x1xf32>,
      %c0_16 = arith.constant 0 : index
      %c0_17 = arith.constant 0 : index
      %c0_18 = arith.constant 0 : index
      %36 = vector.load %arg5[%c0_16, %c0_17, %c0_18] : memref<1x4x1xf32, #tpu.memory_space<vmem>>, vector<1x4x1xf32>
      %37 = vector.shape_cast %36 : vector<1x4x1xf32> to vector<4x1xf32>
      %38 = vector.shape_cast %24 : vector<4x1xf32> to vector<1x4x1xf32>
      tpu.vector_store %arg5[%c0_16, %c0_17, %c0_18], %38 {strides = array<i32>} : memref<1x4x1xf32, #tpu.memory_space<vmem>>, vector<1x4x1xf32>,
      %c0_19 = arith.constant 0 : index
      %c0_20 = arith.constant 0 : index
      %c0_21 = arith.constant 0 : index
      %39 = vector.load %arg6[%c0_19, %c0_20, %c0_21] : memref<1x4x1xf32, #tpu.memory_space<vmem>>, vector<1x4x1xf32>
      %40 = vector.shape_cast %39 : vector<1x4x1xf32> to vector<4x1xf32>
      %41 = vector.shape_cast %26 : vector<4x1xf32> to vector<1x4x1xf32>
      tpu.vector_store %arg6[%c0_19, %c0_20, %c0_21], %41 {strides = array<i32>} : memref<1x4x1xf32, #tpu.memory_space<vmem>>, vector<1x4x1xf32>,
    } else {
    }
    %c0_i32_11 = arith.constant 0 : i32
    %30 = arith.cmpi sgt, %arg1, %c0_i32_11 : i32
    %31 = arith.extui %30 : i1 to i32
    %c0_i32_12 = arith.constant 0 : i32
    %32 = arith.cmpi ne, %31, %c0_i32_12 : i32
    scf.if %32 {
      %c0_13 = arith.constant 0 : index
      %c0_14 = arith.constant 0 : index
      %c0_15 = arith.constant 0 : index
      %33 = vector.load %arg4[%c0_13, %c0_14, %c0_15] : memref<1x4x1xf32, #tpu.memory_space<vmem>>, vector<1x4x1xf32>
      %34 = vector.shape_cast %33 : vector<1x4x1xf32> to vector<4x1xf32>
      %35 = arith.addf %34, %22 : vector<4x1xf32>
      %c0_16 = arith.constant 0 : index
      %c0_17 = arith.constant 0 : index
      %c0_18 = arith.constant 0 : index
      %36 = vector.load %arg4[%c0_16, %c0_17, %c0_18] : memref<1x4x1xf32, #tpu.memory_space<vmem>>, vector<1x4x1xf32>
      %37 = vector.shape_cast %36 : vector<1x4x1xf32> to vector<4x1xf32>
      %38 = vector.shape_cast %35 : vector<4x1xf32> to vector<1x4x1xf32>
      tpu.vector_store %arg4[%c0_16, %c0_17, %c0_18], %38 {strides = array<i32>} : memref<1x4x1xf32, #tpu.memory_space<vmem>>, vector<1x4x1xf32>,
      %c0_19 = arith.constant 0 : index
      %c0_20 = arith.constant 0 : index
      %c0_21 = arith.constant 0 : index
      %39 = vector.load %arg5[%c0_19, %c0_20, %c0_21] : memref<1x4x1xf32, #tpu.memory_space<vmem>>, vector<1x4x1xf32>
      %40 = vector.shape_cast %39 : vector<1x4x1xf32> to vector<4x1xf32>
      %41 = arith.addf %40, %24 : vector<4x1xf32>
      %c0_22 = arith.constant 0 : index
      %c0_23 = arith.constant 0 : index
      %c0_24 = arith.constant 0 : index
      %42 = vector.load %arg5[%c0_22, %c0_23, %c0_24] : memref<1x4x1xf32, #tpu.memory_space<vmem>>, vector<1x4x1xf32>
      %43 = vector.shape_cast %42 : vector<1x4x1xf32> to vector<4x1xf32>
      %44 = vector.shape_cast %41 : vector<4x1xf32> to vector<1x4x1xf32>
      tpu.vector_store %arg5[%c0_22, %c0_23, %c0_24], %44 {strides = array<i32>} : memref<1x4x1xf32, #tpu.memory_space<vmem>>, vector<1x4x1xf32>,
      %c0_25 = arith.constant 0 : index
      %c0_26 = arith.constant 0 : index
      %c0_27 = arith.constant 0 : index
      %45 = vector.load %arg6[%c0_25, %c0_26, %c0_27] : memref<1x4x1xf32, #tpu.memory_space<vmem>>, vector<1x4x1xf32>
      %46 = vector.shape_cast %45 : vector<1x4x1xf32> to vector<4x1xf32>
      %47 = arith.addf %46, %26 : vector<4x1xf32>
      %c0_28 = arith.constant 0 : index
      %c0_29 = arith.constant 0 : index
      %c0_30 = arith.constant 0 : index
      %48 = vector.load %arg6[%c0_28, %c0_29, %c0_30] : memref<1x4x1xf32, #tpu.memory_space<vmem>>, vector<1x4x1xf32>
      %49 = vector.shape_cast %48 : vector<1x4x1xf32> to vector<4x1xf32>
      %50 = vector.shape_cast %47 : vector<4x1xf32> to vector<1x4x1xf32>
      tpu.vector_store %arg6[%c0_28, %c0_29, %c0_30], %50 {strides = array<i32>} : memref<1x4x1xf32, #tpu.memory_space<vmem>>, vector<1x4x1xf32>,
    } else {
    }
    return
  }
  func.func @transform_0(%arg0: i32, %arg1: i32) -> (i32, i32, i32) {
    %c0_i32 = arith.constant 0 : i32
    %c0_i32_0 = arith.constant 0 : i32
    return %arg0, %c0_i32, %arg1 : i32, i32, i32
  }
  func.func @transform_1(%arg0: i32, %arg1: i32) -> (i32, i32, i32) {
    %c0_i32 = arith.constant 0 : i32
    %c0_i32_0 = arith.constant 0 : i32
    return %arg0, %c0_i32, %arg1 : i32, i32, i32
  }
  func.func @transform_2(%arg0: i32, %arg1: i32) -> (i32, i32, i32) {
    %c0_i32 = arith.constant 0 : i32
    %c0_i32_0 = arith.constant 0 : i32
    %c0_i32_1 = arith.constant 0 : i32
    return %arg0, %c0_i32, %c0_i32_0 : i32, i32, i32
  }
  func.func @transform_3(%arg0: i32, %arg1: i32) -> (i32, i32, i32) {
    %c0_i32 = arith.constant 0 : i32
    %c0_i32_0 = arith.constant 0 : i32
    %c0_i32_1 = arith.constant 0 : i32
    return %arg0, %c0_i32, %c0_i32_0 : i32, i32, i32
  }
  func.func @transform_4(%arg0: i32, %arg1: i32) -> (i32, i32, i32) {
    %c0_i32 = arith.constant 0 : i32
    %c0_i32_0 = arith.constant 0 : i32
    %c0_i32_1 = arith.constant 0 : i32
    return %arg0, %c0_i32, %c0_i32_0 : i32, i32, i32
  }
}

</mosaic_0001>

<llo_original>
// kernel: tpu_custom_call.1
$region0: #{tpu_custom_call.1}
  #allocation0 [shape = 'u32[]', space=smem, size = 0x4, offset = 0x4, fixed_abs, tag = 'smem constant byte address 0x4 - core index']
  #allocation1 [shape = 'u32[72,128]{1,0:T(1,128)}', space=vmem, size = 0x9000, scoped, tag = 'internal scratch']
  %s0 = inlined_call_operand.hbm [shape: f32[2,4,1024], index: 0, kind: input, shape index: {}]
  %s1 = inlined_call_operand.hbm [shape: s32[2,1,1024], index: 1, kind: input, shape index: {}]
  %s2 = inlined_call_operand.vmem [shape: f32[2,4,1], index: 2, kind: output, shape index: {0}]
  %s3 = inlined_call_operand.vmem [shape: f32[2,4,1], index: 3, kind: output, shape index: {1}]
  %s4 = inlined_call_operand.vmem [shape: f32[2,4,1], index: 4, kind: output, shape index: {2}]
  %5 = xla_tuple %s2, %s3, %s4
  %s6 = sld [smem:[#allocation0]]
  $region73: #{tpu_custom_call.1} parent=0
    _
  %s8 = ssub.s32 1, %s6
  %s9 = scalar_select 0, %s8, %s6
  $region1: #{tpu_custom_call.1} parent=0
    #allocation2 [shape = 'u8[32768]{0}', space=vmem, size = 0x8000, scoped, tag = 'input window, operand 0']
    #allocation3 [shape = 's32[2]{0}', space=sflag, size = 0x8, scoped, tag = 'scoped memory for tpu_custom_call.1']
    #allocation4 [shape = 'u8[8192]{0}', space=vmem, size = 0x2000, scoped, tag = 'input window, operand 1']
    #allocation5 [shape = 's32[2]{0}', space=sflag, size = 0x8, scoped, tag = 'scoped memory for tpu_custom_call.1']
    %10 = vsyncpa [#allocation3], 0
    %s11 = scalar_lea.sflag [#allocation3], 1
    %12 = vsyncpa %s11, 0
    %13 = vsyncpa [#allocation5], 0
    %s14 = scalar_lea.sflag [#allocation5], 1
    %15 = vsyncpa %s14, 0
    loop: start=0, step=1, limit=4
    $region2: #{tpu_custom_call.1} parent=1 // loop_pre_header
      _
    $region3: #{tpu_custom_call.1} parent=1 // loop_header
      %s17 = sphi 0, %s21
      %p18 = scmp.ge.s32.totalorder %s17, 4
      %s24 = sphi 0, %s36
      %s25 = sphi 0, %s32
      %s26 = sphi 0, %s24
      %s27 = sphi 0, %s25
      %s28 = sphi 0, %s26
      %s29 = sphi 0, %s27
      %s41 = sphi 0, %s43
      %s44 = sphi 0, %s41
      %s45 = sphi 0, %s44
      %s61 = sphi 0, %s45
      %s69 = sphi 0, %s71
      %s72 = sphi 0, %s69
      %s73 = sphi 0, %s72
      %s89 = sphi 0, %s73
      %s95 = sphi 0, %s97
      %s98 = sphi 0, %s95
      %s99 = sphi 0, %s98
      %s115 = sphi 0, %s99
      %s121 = sphi 0, %s123
      %s124 = sphi 0, %s121
      %s125 = sphi 0, %s124
      %s141 = sphi 0, %s125
      %s147 = sphi 0, %s149
      %s150 = sphi 0, %s147
      %s151 = sphi 0, %s150
      %s167 = sphi 0, %s151
    $region4: #{tpu_custom_call.1} parent=1 // loop_header_branch
      %20 = sbr.rel (%p18) target = $region8
    $region5: #{tpu_custom_call.1} parent=1 // loop_body
      %s22 = ssub.s32 %s17, 1
      %s23 = ssub.s32 %s17, 2
      %s30 = sadd.s32 1, %s25
      %p31 = scmp.ge.s32.totalorder %s30, 1
      %s32 = scalar_select %p31, 0, %s30
      %s33 = sadd.s32 1, %s24
      %s34 = scalar_select %p31, %s33, %s24
      %p35 = scmp.ge.s32.totalorder %s34, 2
      %s36 = scalar_select %p35, 0, %s34
      %s37 = ssub.s32 %s24, %s36
      %s38 = ssub.s32 %s25, %s32
      %s39 = sor.u32 %s37, %s38
      %p40 = scmp.eq.s32.totalorder %s39, 0
      %s42 = sadd.s32 %s41, 1
      %s43 = scalar_select %p40, %s41, %s42
      %p46 = pneg %p40
      %p47 = scmp.eq.s32.totalorder %s17, 1
      %p48 = por %p46, %p47
      %p49 = scmp.ne.s32.totalorder %s41, %s44
      %p50 = scmp.eq.s32.totalorder %s17, 0
      %p51 = por %p49, %p50
      %p52 = scmp.ne.s32.totalorder %s41, %s44
      %p53 = scmp.eq.s32.totalorder %s22, 1
      %p54 = por %p52, %p53
      %p55 = scmp.ne.s32.totalorder %s44, %s45
      %p56 = scmp.eq.s32.totalorder %s22, 0
      %p57 = por %p55, %p56
      %p58 = scmp.ne.s32.totalorder %s44, %s45
      %p59 = scmp.eq.s32.totalorder %s23, 1
      %p60 = por %p58, %p59
      %p62 = scmp.ne.s32.totalorder %s45, %s61
      %p63 = scmp.eq.s32.totalorder %s23, 0
      %p64 = por %p62, %p63
      %s65 = ssub.s32 %s24, %s36
      %s66 = ssub.s32 %s25, %s32
      %s67 = sor.u32 %s65, %s66
      %p68 = scmp.eq.s32.totalorder %s67, 0
      %s70 = sadd.s32 %s69, 1
      %s71 = scalar_select %p68, %s69, %s70
      %p74 = pneg %p68
      %p75 = scmp.eq.s32.totalorder %s17, 1
      %p76 = por %p74, %p75
      %p77 = scmp.ne.s32.totalorder %s69, %s72
      %p78 = scmp.eq.s32.totalorder %s17, 0
      %p79 = por %p77, %p78
      %p80 = scmp.ne.s32.totalorder %s69, %s72
      %p81 = scmp.eq.s32.totalorder %s22, 1
      %p82 = por %p80, %p81
      %p83 = scmp.ne.s32.totalorder %s72, %s73
      %p84 = scmp.eq.s32.totalorder %s22, 0
      %p85 = por %p83, %p84
      %p86 = scmp.ne.s32.totalorder %s72, %s73
      %p87 = scmp.eq.s32.totalorder %s23, 1
      %p88 = por %p86, %p87
      %p90 = scmp.ne.s32.totalorder %s73, %s89
      %p91 = scmp.eq.s32.totalorder %s23, 0
      %p92 = por %p90, %p91
      %s93 = ssub.s32 %s24, %s36
      %p94 = scmp.eq.s32.totalorder %s93, 0
      %s96 = sadd.s32 %s95, 1
      %s97 = scalar_select %p94, %s95, %s96
      %p100 = pneg %p94
      %p101 = scmp.eq.s32.totalorder %s17, 1
      %p102 = por %p100, %p101
      %p103 = scmp.ne.s32.totalorder %s95, %s98
      %p104 = scmp.eq.s32.totalorder %s17, 0
      %p105 = por %p103, %p104
      %p106 = scmp.ne.s32.totalorder %s95, %s98
      %p107 = scmp.eq.s32.totalorder %s22, 1
      %p108 = por %p106, %p107
      %p109 = scmp.ne.s32.totalorder %s98, %s99
      %p110 = scmp.eq.s32.totalorder %s22, 0
      %p111 = por %p109, %p110
      %p112 = scmp.ne.s32.totalorder %s98, %s99
      %p113 = scmp.eq.s32.totalorder %s23, 1
      %p114 = por %p112, %p113
      %p116 = scmp.ne.s32.totalorder %s99, %s115
      %p117 = scmp.eq.s32.totalorder %s23, 0
      %p118 = por %p116, %p117
      %s119 = ssub.s32 %s24, %s36
      %p120 = scmp.eq.s32.totalorder %s119, 0
      %s122 = sadd.s32 %s121, 1
      %s123 = scalar_select %p120, %s121, %s122
      %p126 = pneg %p120
      %p127 = scmp.eq.s32.totalorder %s17, 1
      %p128 = por %p126, %p127
      %p129 = scmp.ne.s32.totalorder %s121, %s124
      %p130 = scmp.eq.s32.totalorder %s17, 0
      %p131 = por %p129, %p130
      %p132 = scmp.ne.s32.totalorder %s121, %s124
      %p133 = scmp.eq.s32.totalorder %s22, 1
      %p134 = por %p132, %p133
      %p135 = scmp.ne.s32.totalorder %s124, %s125
      %p136 = scmp.eq.s32.totalorder %s22, 0
      %p137 = por %p135, %p136
      %p138 = scmp.ne.s32.totalorder %s124, %s125
      %p139 = scmp.eq.s32.totalorder %s23, 1
      %p140 = por %p138, %p139
      %p142 = scmp.ne.s32.totalorder %s125, %s141
      %p143 = scmp.eq.s32.totalorder %s23, 0
      %p144 = por %p142, %p143
      %s145 = ssub.s32 %s24, %s36
      %p146 = scmp.eq.s32.totalorder %s145, 0
      %s148 = sadd.s32 %s147, 1
      %s149 = scalar_select %p146, %s147, %s148
      %p152 = pneg %p146
      %p153 = scmp.eq.s32.totalorder %s17, 1
      %p154 = por %p152, %p153
      %p155 = scmp.ne.s32.totalorder %s147, %s150
      %p156 = scmp.eq.s32.totalorder %s17, 0
      %p157 = por %p155, %p156
      %p158 = scmp.ne.s32.totalorder %s147, %s150
      %p159 = scmp.eq.s32.totalorder %s22, 1
      %p160 = por %p158, %p159
      %p161 = scmp.ne.s32.totalorder %s150, %s151
      %p162 = scmp.eq.s32.totalorder %s22, 0
      %p163 = por %p161, %p162
      %p164 = scmp.ne.s32.totalorder %s150, %s151
      %p165 = scmp.eq.s32.totalorder %s23, 1
      %p166 = por %p164, %p165
      %p168 = scmp.ne.s32.totalorder %s151, %s167
      %p169 = scmp.eq.s32.totalorder %s23, 0
      %p170 = por %p168, %p169
      %p171 = scmp.le.s32.totalorder 1, %s17
      %p172 = scmp.lt.s32.totalorder %s17, 3
      %p173 = pnand %p171, %p172
      %p174 = pneg %p173
      // Predicated region
      $region9: #{tpu_custom_call.1} parent=5 // pred_check
        _
      $region10: #{tpu_custom_call.1} parent=5 // pred_check_branch
        %176 = sbr.rel (%p173) target = $region12
      $region11: #{tpu_custom_call.1} parent=5 // pred_region
        %s177 = ssub.s32 %s17, 1
      $region12: #{tpu_custom_call.1} parent=5 // pred_fallthru
        _
      %p178 = scmp.lt.s32.totalorder %s17, 2
      // Predicated region
      $region13: #{tpu_custom_call.1} parent=5 // pred_check
        %p179 = pneg %p178
      $region14: #{tpu_custom_call.1} parent=5 // pred_check_branch
        %181 = sbr.rel (%p179) target = $region16
      $region15: #{tpu_custom_call.1} parent=5 // pred_region
        // Predicated region
        $region17: #{tpu_custom_call.1} parent=15 // pred_check
          %p182 = pneg %p51
        $region18: #{tpu_custom_call.1} parent=15 // pred_check_branch
          %184 = sbr.rel (%p182) target = $region20
        $region19: #{tpu_custom_call.1} parent=15 // pred_region
          %s185 = sand.u32 %s41, 1
          %s186 = scalar_lea.sflag [#allocation3], %s185
          %s187 = sand.u32 %s41, 1
          %s188 = smul.addr %s187, 32
          %s189 = scalar_lea.vmem [#allocation2], %s188
          %s190 = smul.u32 8, %s25
          %192 = vsyncadd %s186, 0
          %s193 = smul.addr %s24, 8
          %s194 = sadd.s32 %s190, %s193
          %s195 = smul.addr %s194, 4
          %s196 = scalar_lea.hbm %s0, %s195
          %s198 = sshll.u32 %s196, 4
          %s199 = int_to_ptr.hbm [resolvable:$true] %s198
          %s200 = sshll.u32 %s189, 4
          %s201 = int_to_ptr.vmem [resolvable:$true] %s200
          %203 = dma.hbm_to_vmem [thread:$0]  %s199, 512, %s201, %s186
        $region20: #{tpu_custom_call.1} parent=15 // pred_fallthru
          _
        // Predicated region
        $region21: #{tpu_custom_call.1} parent=15 // pred_check
          %p204 = pneg %p79
        $region22: #{tpu_custom_call.1} parent=15 // pred_check_branch
          %206 = sbr.rel (%p204) target = $region24
        $region23: #{tpu_custom_call.1} parent=15 // pred_region
          %s207 = sand.u32 %s69, 1
          %s208 = scalar_lea.sflag [#allocation5], %s207
          %s209 = sand.u32 %s69, 1
          %s210 = smul.addr %s209, 8
          %s211 = scalar_lea.vmem [#allocation4], %s210
          %s212 = smul.u32 8, %s25
          %214 = vsyncadd %s208, 0
          %s215 = smul.addr %s24, 8
          %s216 = sadd.s32 %s212, %s215
          %s217 = scalar_lea.hbm %s1, %s216
          %s219 = sshll.u32 %s217, 4
          %s220 = int_to_ptr.hbm [resolvable:$true] %s219
          %s221 = sshll.u32 %s211, 4
          %s222 = int_to_ptr.vmem [resolvable:$true] %s221
          %224 = dma.hbm_to_vmem [thread:$0]  %s220, 128, %s222, %s208
        $region24: #{tpu_custom_call.1} parent=15 // pred_fallthru
          _
      $region16: #{tpu_custom_call.1} parent=5 // pred_fallthru
        _
      %p225 = scmp.le.s32.totalorder 1, %s17
      %p226 = scmp.lt.s32.totalorder %s17, 3
      %p227 = pnand %p225, %p226
      %p228 = pneg %p227
      // Predicated region
      $region25: #{tpu_custom_call.1} parent=5 // pred_check
        _
      $region26: #{tpu_custom_call.1} parent=5 // pred_check_branch
        %230 = sbr.rel (%p227) target = $region28
      $region27: #{tpu_custom_call.1} parent=5 // pred_region
        %s231 = ssub.s32 %s17, 1
        %s232 = sand.u32 %s44, 1
        %s233 = scalar_lea.sflag [#allocation3], %s232
        %s234 = sand.u32 %s44, 1
        %s235 = smul.addr %s234, 32
        %s236 = scalar_lea.vmem [#allocation2], %s235
        // Predicated region
        $region29: #{tpu_custom_call.1} parent=27 // pred_check
          %p237 = pneg %p57
        $region30: #{tpu_custom_call.1} parent=27 // pred_check_branch
          %239 = sbr.rel (%p237) target = $region32
        $region31: #{tpu_custom_call.1} parent=27 // pred_region
          %241 = dma.done %s233, 512
        $region32: #{tpu_custom_call.1} parent=27 // pred_fallthru
          _
        %s242 = sand.u32 %s72, 1
        %s243 = scalar_lea.sflag [#allocation5], %s242
        %s244 = sand.u32 %s72, 1
        %s245 = smul.addr %s244, 8
        %s246 = scalar_lea.vmem [#allocation4], %s245
        // Predicated region
        $region33: #{tpu_custom_call.1} parent=27 // pred_check
          %p247 = pneg %p85
        $region34: #{tpu_custom_call.1} parent=27 // pred_check_branch
          %249 = sbr.rel (%p247) target = $region36
        $region35: #{tpu_custom_call.1} parent=27 // pred_region
          %251 = dma.done %s243, 128
        $region36: #{tpu_custom_call.1} parent=27 // pred_fallthru
          _
        %s252 = sand.u32 %s44, 1
        %s253 = scalar_lea.sflag [#allocation3], %s252
        %s254 = sand.u32 %s44, 1
        %s255 = smul.addr %s254, 32
        %s256 = scalar_lea.vmem [#allocation2], %s255
        %p257 = pneg %p57
        %p258 = pneg %p54
        %s259 = sand.u32 %s72, 1
        %s260 = scalar_lea.sflag [#allocation5], %s259
        %s261 = sand.u32 %s72, 1
        %s262 = smul.addr %s261, 8
        %s263 = scalar_lea.vmem [#allocation4], %s262
        %p264 = pneg %p85
        %p265 = pneg %p82
        %p266 = pneg %p111
        %p267 = pneg %p108
        %p268 = scmp.lt.s32.totalorder %s26, 1
        %s269 = scalar_select %p268, %s26, 1
        %s270 = smul.addr %s269, 4
        %s271 = scalar_lea.vmem %s2, %s270
        %p272 = pneg %p137
        %p273 = pneg %p134
        %p274 = scmp.lt.s32.totalorder %s26, 1
        %s275 = scalar_select %p274, %s26, 1
        %s276 = smul.addr %s275, 4
        %s277 = scalar_lea.vmem %s3, %s276
        %p278 = pneg %p163
        %p279 = pneg %p160
        %p280 = scmp.lt.s32.totalorder %s26, 1
        %s281 = scalar_select %p280, %s26, 1
        %s282 = smul.addr %s281, 4
        %s283 = scalar_lea.vmem %s4, %s282
        %s284 = smul.u32 8, %s27
        %s285 = smul.u32 8, %s27
        %p286 = scmp.lt.s32.totalorder %s26, 1
        %s287 = scalar_select %p286, %s26, 1
        %s288 = smul.addr %s287, 4
        %s289 = scalar_lea.vmem %s2, %s288
        %p290 = scmp.lt.s32.totalorder %s26, 1
        %s291 = scalar_select %p290, %s26, 1
        %s292 = smul.addr %s291, 4
        %s293 = scalar_lea.vmem %s3, %s292
        %p294 = scmp.lt.s32.totalorder %s26, 1
        %s295 = scalar_select %p294, %s26, 1
        %s296 = smul.addr %s295, 4
        %s297 = scalar_lea.vmem %s4, %s296
        %v298 = vld [vmem:[%s236] sm:$0xff]
        %v299 = vld [vmem:[%s236 + $0x8] sm:$0xff]
        %v300 = vld [vmem:[%s236 + $0x10] sm:$0xff]
        %v301 = vld [vmem:[%s236 + $0x18] sm:$0xff]
        %v302 = vld [vmem:[%s246] sm:$0xff]
        %307 = vst [vmem:[#allocation1] ss:$2 sm:$0xff] %v298
        %s308 = scalar_lea.vmem [#allocation1], 16
        %309 = vst [vmem:[%s308] ss:$2 sm:$0xff] %v299
        %s310 = scalar_lea.vmem [#allocation1], 32
        %311 = vst [vmem:[%s310] ss:$2 sm:$0xff] %v300
        %s312 = scalar_lea.vmem [#allocation1], 48
        %313 = vst [vmem:[%s312] ss:$2 sm:$0xff] %v301
        %v314 = vld.sshfl [vmem:[#allocation1] sm:$0xff pattern:$0x75316420]
        %v315 = vld.sshfl [vmem:[#allocation1 + $0x8] sm:$0xff pattern:$0x75316420]
        %v316 = vld.sshfl [vmem:[#allocation1 + $0x10] sm:$0xff pattern:$0x75316420]
        %v317 = vld.sshfl [vmem:[#allocation1 + $0x18] sm:$0xff pattern:$0x75316420]
        %v318 = vld.sshfl [vmem:[#allocation1 + $0x20] sm:$0xff pattern:$0x75316420]
        %v319 = vld.sshfl [vmem:[#allocation1 + $0x28] sm:$0xff pattern:$0x75316420]
        %v320 = vld.sshfl [vmem:[#allocation1 + $0x30] sm:$0xff pattern:$0x75316420]
        %v321 = vld.sshfl [vmem:[#allocation1 + $0x38] sm:$0xff pattern:$0x75316420]
        %vm330 = vcmask 1043456
        %v331 = vsel %vm330, %v314, -inf
        %v332 = vrot.slane %v331, 4
        %v333 = vmax.f32 %v331, %v332
        %v334 = vrot.slane %v333, 2
        %v335 = vmax.f32 %v333, %v334
        %v336 = vrot.slane %v335, 1
        %v337 = vmax.f32 %v335, %v336
        %v338 = vsel %vm330, %v315, -inf
        %v339 = vrot.slane %v338, 4
        %v340 = vmax.f32 %v338, %v339
        %v341 = vrot.slane %v340, 2
        %v342 = vmax.f32 %v340, %v341
        %v343 = vrot.slane %v342, 1
        %v344 = vmax.f32 %v342, %v343
        %v345 = vsel %vm330, %v316, -inf
        %v346 = vrot.slane %v345, 4
        %v347 = vmax.f32 %v345, %v346
        %v348 = vrot.slane %v347, 2
        %v349 = vmax.f32 %v347, %v348
        %v350 = vrot.slane %v349, 1
        %v351 = vmax.f32 %v349, %v350
        %v352 = vsel %vm330, %v317, -inf
        %v353 = vrot.slane %v352, 4
        %v354 = vmax.f32 %v352, %v353
        %v355 = vrot.slane %v354, 2
        %v356 = vmax.f32 %v354, %v355
        %v357 = vrot.slane %v356, 1
        %v358 = vmax.f32 %v356, %v357
        %v359 = vsel %vm330, %v318, -inf
        %v360 = vrot.slane %v359, 4
        %v361 = vmax.f32 %v359, %v360
        %v362 = vrot.slane %v361, 2
        %v363 = vmax.f32 %v361, %v362
        %v364 = vrot.slane %v363, 1
        %v365 = vmax.f32 %v363, %v364
        %v366 = vsel %vm330, %v319, -inf
        %v367 = vrot.slane %v366, 4
        %v368 = vmax.f32 %v366, %v367
        %v369 = vrot.slane %v368, 2
        %v370 = vmax.f32 %v368, %v369
        %v371 = vrot.slane %v370, 1
        %v372 = vmax.f32 %v370, %v371
        %v373 = vsel %vm330, %v320, -inf
        %v374 = vrot.slane %v373, 4
        %v375 = vmax.f32 %v373, %v374
        %v376 = vrot.slane %v375, 2
        %v377 = vmax.f32 %v375, %v376
        %v378 = vrot.slane %v377, 1
        %v379 = vmax.f32 %v377, %v378
        %v380 = vsel %vm330, %v321, -inf
        %v381 = vrot.slane %v380, 4
        %v382 = vmax.f32 %v380, %v381
        %v383 = vrot.slane %v382, 2
        %v384 = vmax.f32 %v382, %v383
        %v385 = vrot.slane %v384, 1
        %v386 = vmax.f32 %v384, %v385
        %v395 = vrot.slane %v344, 4
        %v396 = vrot.slane %v358, 4
        %v397 = vrot.slane %v372, 4
        %v398 = vrot.slane %v386, 4
        %v399 = vsel %vm330, %v337, %v395
        %v400 = vsel %vm330, %v351, %v396
        %v401 = vsel %vm330, %v365, %v397
        %v402 = vsel %vm330, %v379, %v398
        %v407 = vsub.f32 %v298, %v399
        %v408 = vsub.f32 %v299, %v400
        %v409 = vsub.f32 %v300, %v401
        %v410 = vsub.f32 %v301, %v402
        %v411 = vmul.f32 %v407, 1.442695
        %v412 = vpow.pop %v411
        %v413 = vmul.f32 %v408, 1.442695
        %v414 = vpow.pop %v413
        %v415 = vmul.f32 %v409, 1.442695
        %v416 = vpow.pop %v415
        %v417 = vmul.f32 %v410, 1.442695
        %v418 = vpow.pop %v417
        %423 = vst [vmem:[#allocation1] ss:$2 sm:$0xff] %v412
        %s424 = scalar_lea.vmem [#allocation1], 16
        %425 = vst [vmem:[%s424] ss:$2 sm:$0xff] %v414
        %s426 = scalar_lea.vmem [#allocation1], 32
        %427 = vst [vmem:[%s426] ss:$2 sm:$0xff] %v416
        %s428 = scalar_lea.vmem [#allocation1], 48
        %429 = vst [vmem:[%s428] ss:$2 sm:$0xff] %v418
        %v430 = vld.sshfl [vmem:[#allocation1] sm:$0xff pattern:$0x75316420]
        %v431 = vld.sshfl [vmem:[#allocation1 + $0x8] sm:$0xff pattern:$0x75316420]
        %v432 = vld.sshfl [vmem:[#allocation1 + $0x10] sm:$0xff pattern:$0x75316420]
        %v433 = vld.sshfl [vmem:[#allocation1 + $0x18] sm:$0xff pattern:$0x75316420]
        %v434 = vld.sshfl [vmem:[#allocation1 + $0x20] sm:$0xff pattern:$0x75316420]
        %v435 = vld.sshfl [vmem:[#allocation1 + $0x28] sm:$0xff pattern:$0x75316420]
        %v436 = vld.sshfl [vmem:[#allocation1 + $0x30] sm:$0xff pattern:$0x75316420]
        %v437 = vld.sshfl [vmem:[#allocation1 + $0x38] sm:$0xff pattern:$0x75316420]
        %v446 = vsel %vm330, %v430, 0.0
        %v447 = vrot.slane %v446, 4
        %v448 = vadd.f32 %v446, %v447
        %v449 = vrot.slane %v448, 2
        %v450 = vadd.f32 %v448, %v449
        %v451 = vrot.slane %v450, 1
        %v452 = vadd.f32 %v450, %v451
        %v453 = vsel %vm330, %v431, 0.0
        %v454 = vrot.slane %v453, 4
        %v455 = vadd.f32 %v453, %v454
        %v456 = vrot.slane %v455, 2
        %v457 = vadd.f32 %v455, %v456
        %v458 = vrot.slane %v457, 1
        %v459 = vadd.f32 %v457, %v458
        %v460 = vsel %vm330, %v432, 0.0
        %v461 = vrot.slane %v460, 4
        %v462 = vadd.f32 %v460, %v461
        %v463 = vrot.slane %v462, 2
        %v464 = vadd.f32 %v462, %v463
        %v465 = vrot.slane %v464, 1
        %v466 = vadd.f32 %v464, %v465
        %v467 = vsel %vm330, %v433, 0.0
        %v468 = vrot.slane %v467, 4
        %v469 = vadd.f32 %v467, %v468
        %v470 = vrot.slane %v469, 2
        %v471 = vadd.f32 %v469, %v470
        %v472 = vrot.slane %v471, 1
        %v473 = vadd.f32 %v471, %v472
        %v474 = vsel %vm330, %v434, 0.0
        %v475 = vrot.slane %v474, 4
        %v476 = vadd.f32 %v474, %v475
        %v477 = vrot.slane %v476, 2
        %v478 = vadd.f32 %v476, %v477
        %v479 = vrot.slane %v478, 1
        %v480 = vadd.f32 %v478, %v479
        %v481 = vsel %vm330, %v435, 0.0
        %v482 = vrot.slane %v481, 4
        %v483 = vadd.f32 %v481, %v482
        %v484 = vrot.slane %v483, 2
        %v485 = vadd.f32 %v483, %v484
        %v486 = vrot.slane %v485, 1
        %v487 = vadd.f32 %v485, %v486
        %v488 = vsel %vm330, %v436, 0.0
        %v489 = vrot.slane %v488, 4
        %v490 = vadd.f32 %v488, %v489
        %v491 = vrot.slane %v490, 2
        %v492 = vadd.f32 %v490, %v491
        %v493 = vrot.slane %v492, 1
        %v494 = vadd.f32 %v492, %v493
        %v495 = vsel %vm330, %v437, 0.0
        %v496 = vrot.slane %v495, 4
        %v497 = vadd.f32 %v495, %v496
        %v498 = vrot.slane %v497, 2
        %v499 = vadd.f32 %v497, %v498
        %v500 = vrot.slane %v499, 1
        %v501 = vadd.f32 %v499, %v500
        %v502 = vrcp.pop %v452
        %v503 = vmul.f32 %v452, %v502
        %v504 = vsub.f32 1.0, %v503
        %v505 = vmul.f32 %v502, %v504
        %v506 = vadd.f32 %v502, %v505
        %vm507 = vweird.f32 %v452
        %vm508 = vweird.f32 %v502
        %vm509 = vmor %vm507, %vm508
        %v510 = vsel %vm509, %v502, %v506
        %v511 = vand.u32 2147483647, %v452
        %vm512 = vcmp.eq.f32.partialorder %v511, 8.507059e+37
        %v513 = vand.u32 %v452, 2147483648
        %v514 = vor.u32 1.1754944e-38, %v513
        %v515 = vsel %vm512, %v514, %v510
        %v516 = vmul.f32 1.0, %v515
        %v517 = vrcp.pop %v459
        %v518 = vmul.f32 %v459, %v517
        %v519 = vsub.f32 1.0, %v518
        %v520 = vmul.f32 %v517, %v519
        %v521 = vadd.f32 %v517, %v520
        %vm522 = vweird.f32 %v459
        %vm523 = vweird.f32 %v517
        %vm524 = vmor %vm522, %vm523
        %v525 = vsel %vm524, %v517, %v521
        %v526 = vand.u32 2147483647, %v459
        %vm527 = vcmp.eq.f32.partialorder %v526, 8.507059e+37
        %v528 = vand.u32 %v459, 2147483648
        %v529 = vor.u32 1.1754944e-38, %v528
        %v530 = vsel %vm527, %v529, %v525
        %v531 = vmul.f32 1.0, %v530
        %v532 = vrcp.pop %v466
        %v533 = vmul.f32 %v466, %v532
        %v534 = vsub.f32 1.0, %v533
        %v535 = vmul.f32 %v532, %v534
        %v536 = vadd.f32 %v532, %v535
        %vm537 = vweird.f32 %v466
        %vm538 = vweird.f32 %v532
        %vm539 = vmor %vm537, %vm538
        %v540 = vsel %vm539, %v532, %v536
        %v541 = vand.u32 2147483647, %v466
        %vm542 = vcmp.eq.f32.partialorder %v541, 8.507059e+37
        %v543 = vand.u32 %v466, 2147483648
        %v544 = vor.u32 1.1754944e-38, %v543
        %v545 = vsel %vm542, %v544, %v540
        %v546 = vmul.f32 1.0, %v545
        %v547 = vrcp.pop %v473
        %v548 = vmul.f32 %v473, %v547
        %v549 = vsub.f32 1.0, %v548
        %v550 = vmul.f32 %v547, %v549
        %v551 = vadd.f32 %v547, %v550
        %vm552 = vweird.f32 %v473
        %vm553 = vweird.f32 %v547
        %vm554 = vmor %vm552, %vm553
        %v555 = vsel %vm554, %v547, %v551
        %v556 = vand.u32 2147483647, %v473
        %vm557 = vcmp.eq.f32.partialorder %v556, 8.507059e+37
        %v558 = vand.u32 %v473, 2147483648
        %v559 = vor.u32 1.1754944e-38, %v558
        %v560 = vsel %vm557, %v559, %v555
        %v561 = vmul.f32 1.0, %v560
        %v562 = vrcp.pop %v480
        %v563 = vmul.f32 %v480, %v562
        %v564 = vsub.f32 1.0, %v563
        %v565 = vmul.f32 %v562, %v564
        %v566 = vadd.f32 %v562, %v565
        %vm567 = vweird.f32 %v480
        %vm568 = vweird.f32 %v562
        %vm569 = vmor %vm567, %vm568
        %v570 = vsel %vm569, %v562, %v566
        %v571 = vand.u32 2147483647, %v480
        %vm572 = vcmp.eq.f32.partialorder %v571, 8.507059e+37
        %v573 = vand.u32 %v480, 2147483648
        %v574 = vor.u32 1.1754944e-38, %v573
        %v575 = vsel %vm572, %v574, %v570
        %v576 = vmul.f32 1.0, %v575
        %v577 = vrcp.pop %v487
        %v578 = vmul.f32 %v487, %v577
        %v579 = vsub.f32 1.0, %v578
        %v580 = vmul.f32 %v577, %v579
        %v581 = vadd.f32 %v577, %v580
        %vm582 = vweird.f32 %v487
        %vm583 = vweird.f32 %v577
        %vm584 = vmor %vm582, %vm583
        %v585 = vsel %vm584, %v577, %v581
        %v586 = vand.u32 2147483647, %v487
        %vm587 = vcmp.eq.f32.partialorder %v586, 8.507059e+37
        %v588 = vand.u32 %v487, 2147483648
        %v589 = vor.u32 1.1754944e-38, %v588
        %v590 = vsel %vm587, %v589, %v585
        %v591 = vmul.f32 1.0, %v590
        %v592 = vrcp.pop %v494
        %v593 = vmul.f32 %v494, %v592
        %v594 = vsub.f32 1.0, %v593
        %v595 = vmul.f32 %v592, %v594
        %v596 = vadd.f32 %v592, %v595
        %vm597 = vweird.f32 %v494
        %vm598 = vweird.f32 %v592
        %vm599 = vmor %vm597, %vm598
        %v600 = vsel %vm599, %v592, %v596
        %v601 = vand.u32 2147483647, %v494
        %vm602 = vcmp.eq.f32.partialorder %v601, 8.507059e+37
        %v603 = vand.u32 %v494, 2147483648
        %v604 = vor.u32 1.1754944e-38, %v603
        %v605 = vsel %vm602, %v604, %v600
        %v606 = vmul.f32 1.0, %v605
        %v607 = vrcp.pop %v501
        %v608 = vmul.f32 %v501, %v607
        %v609 = vsub.f32 1.0, %v608
        %v610 = vmul.f32 %v607, %v609
        %v611 = vadd.f32 %v607, %v610
        %vm612 = vweird.f32 %v501
        %vm613 = vweird.f32 %v607
        %vm614 = vmor %vm612, %vm613
        %v615 = vsel %vm614, %v607, %v611
        %v616 = vand.u32 2147483647, %v501
        %vm617 = vcmp.eq.f32.partialorder %v616, 8.507059e+37
        %v618 = vand.u32 %v501, 2147483648
        %v619 = vor.u32 1.1754944e-38, %v618
        %v620 = vsel %vm617, %v619, %v615
        %v621 = vmul.f32 1.0, %v620
        %v630 = vrot.slane %v531, 4
        %v631 = vrot.slane %v561, 4
        %v632 = vrot.slane %v591, 4
        %v633 = vrot.slane %v621, 4
        %v634 = vsel %vm330, %v516, %v630
        %v635 = vsel %vm330, %v546, %v631
        %v636 = vsel %vm330, %v576, %v632
        %v637 = vsel %vm330, %v606, %v633
        %v642 = vmul.f32 %v412, %v634
        %v643 = vmul.f32 %v414, %v635
        %v644 = vmul.f32 %v416, %v636
        %v645 = vmul.f32 %v418, %v637
        %v646 = vlaneseq
        %v647 = vshrl.u32 %v646, 7
        %v648 = vperm.slane %v302, 0
        %v649 = vperm.slane %v302, 1
        %v650 = vperm.slane %v302, 2
        %v651 = vperm.slane %v302, 3
        %v652 = vperm.slane %v302, 4
        %v653 = vperm.slane %v302, 5
        %v654 = vperm.slane %v302, 6
        %v655 = vperm.slane %v302, 7
        %vm656 = vcmp.eq.s32.totalorder %v648, %v647
        %vm657 = vcmp.eq.s32.totalorder %v649, %v647
        %vm658 = vcmp.eq.s32.totalorder %v650, %v647
        %vm659 = vcmp.eq.s32.totalorder %v651, %v647
        %vm660 = vcmp.eq.s32.totalorder %v652, %v647
        %vm661 = vcmp.eq.s32.totalorder %v653, %v647
        %vm662 = vcmp.eq.s32.totalorder %v654, %v647
        %vm663 = vcmp.eq.s32.totalorder %v655, %v647
        %v664 = vsel %vm656, 1, 0
        %v665 = vsel %vm657, 1, 0
        %v666 = vsel %vm658, 1, 0
        %v667 = vsel %vm659, 1, 0
        %v668 = vsel %vm660, 1, 0
        %v669 = vsel %vm661, 1, 0
        %v670 = vsel %vm662, 1, 0
        %v671 = vsel %vm663, 1, 0
        %v672 = vcvt.s32.f32 %v664
        %v673 = vcvt.s32.f32 %v665
        %v674 = vcvt.s32.f32 %v666
        %v675 = vcvt.s32.f32 %v667
        %v676 = vcvt.s32.f32 %v668
        %v677 = vcvt.s32.f32 %v669
        %v678 = vcvt.s32.f32 %v670
        %v679 = vcvt.s32.f32 %v671
        %v688 = vrot.slane %v673, 4
        %v689 = vrot.slane %v675, 4
        %v690 = vrot.slane %v677, 4
        %v691 = vrot.slane %v679, 4
        %v692 = vsel %vm330, %v672, %v688
        %v693 = vsel %vm330, %v674, %v689
        %v694 = vsel %vm330, %v676, %v690
        %v695 = vsel %vm330, %v678, %v691
        %v700 = vmul.f32 %v642, %v692
        %v701 = vmul.f32 %v643, %v693
        %v702 = vmul.f32 %v644, %v694
        %v703 = vmul.f32 %v645, %v695
        %708 = vst [vmem:[#allocation1] ss:$2 sm:$0xff] %v700
        %s709 = scalar_lea.vmem [#allocation1], 16
        %710 = vst [vmem:[%s709] ss:$2 sm:$0xff] %v701
        %s711 = scalar_lea.vmem [#allocation1], 32
        %712 = vst [vmem:[%s711] ss:$2 sm:$0xff] %v702
        %s713 = scalar_lea.vmem [#allocation1], 48
        %714 = vst [vmem:[%s713] ss:$2 sm:$0xff] %v703
        %v715 = vld.sshfl [vmem:[#allocation1] sm:$0xff pattern:$0x75316420]
        %v716 = vld.sshfl [vmem:[#allocation1 + $0x8] sm:$0xff pattern:$0x75316420]
        %v717 = vld.sshfl [vmem:[#allocation1 + $0x10] sm:$0xff pattern:$0x75316420]
        %v718 = vld.sshfl [vmem:[#allocation1 + $0x18] sm:$0xff pattern:$0x75316420]
        %v719 = vld.sshfl [vmem:[#allocation1 + $0x20] sm:$0xff pattern:$0x75316420]
        %v720 = vld.sshfl [vmem:[#allocation1 + $0x28] sm:$0xff pattern:$0x75316420]
        %v721 = vld.sshfl [vmem:[#allocation1 + $0x30] sm:$0xff pattern:$0x75316420]
        %v722 = vld.sshfl [vmem:[#allocation1 + $0x38] sm:$0xff pattern:$0x75316420]
        %v731 = vsel %vm330, %v715, 0.0
        %v732 = vsel %vm330, %v716, 0.0
        %v733 = vadd.f32 %v731, %v732
        %v734 = vsel %vm330, %v717, 0.0
        %v735 = vadd.f32 %v733, %v734
        %v736 = vsel %vm330, %v718, 0.0
        %v737 = vadd.f32 %v735, %v736
        %v738 = vsel %vm330, %v719, 0.0
        %v739 = vadd.f32 %v737, %v738
        %v740 = vsel %vm330, %v720, 0.0
        %v741 = vadd.f32 %v739, %v740
        %v742 = vsel %vm330, %v721, 0.0
        %v743 = vadd.f32 %v741, %v742
        %v744 = vsel %vm330, %v722, 0.0
        %v745 = vadd.f32 %v743, %v744
        %746 = vadd.xlane.f32.xlu0 %v745
        %v747 = vpop.xlane.xlu0 %746
        %752 = vst [vmem:[#allocation1] ss:$2 sm:$0xff] %v642
        %s753 = scalar_lea.vmem [#allocation1], 16
        %754 = vst [vmem:[%s753] ss:$2 sm:$0xff] %v643
        %s755 = scalar_lea.vmem [#allocation1], 32
        %756 = vst [vmem:[%s755] ss:$2 sm:$0xff] %v644
        %s757 = scalar_lea.vmem [#allocation1], 48
        %758 = vst [vmem:[%s757] ss:$2 sm:$0xff] %v645
        %v759 = vld.sshfl [vmem:[#allocation1] sm:$0xff pattern:$0x75316420]
        %v760 = vld.sshfl [vmem:[#allocation1 + $0x8] sm:$0xff pattern:$0x75316420]
        %v761 = vld.sshfl [vmem:[#allocation1 + $0x10] sm:$0xff pattern:$0x75316420]
        %v762 = vld.sshfl [vmem:[#allocation1 + $0x18] sm:$0xff pattern:$0x75316420]
        %v763 = vld.sshfl [vmem:[#allocation1 + $0x20] sm:$0xff pattern:$0x75316420]
        %v764 = vld.sshfl [vmem:[#allocation1 + $0x28] sm:$0xff pattern:$0x75316420]
        %v765 = vld.sshfl [vmem:[#allocation1 + $0x30] sm:$0xff pattern:$0x75316420]
        %v766 = vld.sshfl [vmem:[#allocation1 + $0x38] sm:$0xff pattern:$0x75316420]
        %v775 = vsel %vm330, %v759, 0.0
        %v776 = vsel %vm330, %v760, 0.0
        %v777 = vadd.f32 %v775, %v776
        %v778 = vsel %vm330, %v761, 0.0
        %v779 = vadd.f32 %v777, %v778
        %v780 = vsel %vm330, %v762, 0.0
        %v781 = vadd.f32 %v779, %v780
        %v782 = vsel %vm330, %v763, 0.0
        %v783 = vadd.f32 %v781, %v782
        %v784 = vsel %vm330, %v764, 0.0
        %v785 = vadd.f32 %v783, %v784
        %v786 = vsel %vm330, %v765, 0.0
        %v787 = vadd.f32 %v785, %v786
        %v788 = vsel %vm330, %v766, 0.0
        %v789 = vadd.f32 %v787, %v788
        %790 = vadd.xlane.f32.xlu0 %v789
        %v791 = vpop.xlane.xlu0 %790
        %v792 = vsel %vm330, %v672, 0.0
        %v793 = vsel %vm330, %v673, 0.0
        %v794 = vadd.f32 %v792, %v793
        %v795 = vsel %vm330, %v674, 0.0
        %v796 = vadd.f32 %v794, %v795
        %v797 = vsel %vm330, %v675, 0.0
        %v798 = vadd.f32 %v796, %v797
        %v799 = vsel %vm330, %v676, 0.0
        %v800 = vadd.f32 %v798, %v799
        %v801 = vsel %vm330, %v677, 0.0
        %v802 = vadd.f32 %v800, %v801
        %v803 = vsel %vm330, %v678, 0.0
        %v804 = vadd.f32 %v802, %v803
        %v805 = vsel %vm330, %v679, 0.0
        %v806 = vadd.f32 %v804, %v805
        %807 = vadd.xlane.f32.xlu0 %v806
        %v808 = vpop.xlane.xlu0 %807
        %p809 = scmp.eq.s32.totalorder %s27, 0
        // Predicated region
        $region37: #{tpu_custom_call.1} parent=27 // pred_check
          %p810 = pneg %p809
        $region38: #{tpu_custom_call.1} parent=27 // pred_check_branch
          %812 = sbr.rel (%p810) target = $region40
        $region39: #{tpu_custom_call.1} parent=27 // pred_region
          %vm813 = vcmask 3072
          %814 = vst.msk [vmem:[%s289] sm:$0xf] %vm813, %v747
          %815 = vst.msk [vmem:[%s293] sm:$0xf] %vm813, %v791
          %816 = vst.msk [vmem:[%s297] sm:$0xf] %vm813, %v808
        $region40: #{tpu_custom_call.1} parent=27 // pred_fallthru
          _
        %p817 = scmp.gt.s32.totalorder %s27, 0
        // Predicated region
        $region41: #{tpu_custom_call.1} parent=27 // pred_check
          %p818 = pneg %p817
        $region42: #{tpu_custom_call.1} parent=27 // pred_check_branch
          %820 = sbr.rel (%p818) target = $region44
        $region43: #{tpu_custom_call.1} parent=27 // pred_region
          %v821 = vld [vmem:[%s289] sm:$0xf]
          %v822 = vadd.f32 %v821, %v747
          %vm823 = vcmask 3072
          %824 = vst.msk [vmem:[%s289] sm:$0xf] %vm823, %v822
          %v825 = vld [vmem:[%s293] sm:$0xf]
          %v826 = vadd.f32 %v825, %v791
          %827 = vst.msk [vmem:[%s293] sm:$0xf] %vm823, %v826
          %v828 = vld [vmem:[%s297] sm:$0xf]
          %v829 = vadd.f32 %v828, %v808
          %830 = vst.msk [vmem:[%s297] sm:$0xf] %vm823, %v829
        $region44: #{tpu_custom_call.1} parent=27 // pred_fallthru
          _
        %p831 = scmp.lt.s32.totalorder %s26, 1
        %s832 = scalar_select %p831, %s26, 1
        %s833 = smul.addr %s832, 4
        %s834 = scalar_lea.vmem %s2, %s833
        %p835 = scmp.lt.s32.totalorder %s26, 1
        %s836 = scalar_select %p835, %s26, 1
        %s837 = smul.addr %s836, 4
        %s838 = scalar_lea.vmem %s3, %s837
        %p839 = scmp.lt.s32.totalorder %s26, 1
        %s840 = scalar_select %p839, %s26, 1
        %s841 = smul.addr %s840, 4
        %s842 = scalar_lea.vmem %s4, %s841
        // Predicated region
        $region45: #{tpu_custom_call.1} parent=27 // pred_check
          %p843 = pneg %p108
        $region46: #{tpu_custom_call.1} parent=27 // pred_check_branch
          %845 = sbr.rel (%p843) target = $region48
        $region47: #{tpu_custom_call.1} parent=27 // pred_region
          _
        $region48: #{tpu_custom_call.1} parent=27 // pred_fallthru
          _
        // Predicated region
        $region49: #{tpu_custom_call.1} parent=27 // pred_check
          %p846 = pneg %p134
        $region50: #{tpu_custom_call.1} parent=27 // pred_check_branch
          %848 = sbr.rel (%p846) target = $region52
        $region51: #{tpu_custom_call.1} parent=27 // pred_region
          _
        $region52: #{tpu_custom_call.1} parent=27 // pred_fallthru
          _
        // Predicated region
        $region53: #{tpu_custom_call.1} parent=27 // pred_check
          %p849 = pneg %p160
        $region54: #{tpu_custom_call.1} parent=27 // pred_check_branch
          %851 = sbr.rel (%p849) target = $region56
        $region55: #{tpu_custom_call.1} parent=27 // pred_region
          _
        $region56: #{tpu_custom_call.1} parent=27 // pred_fallthru
          _
      $region28: #{tpu_custom_call.1} parent=5 // pred_fallthru
        _
      %p852 = scmp.le.s32.totalorder 2, %s17
      // Predicated region
      $region57: #{tpu_custom_call.1} parent=5 // pred_check
        %p853 = pneg %p852
      $region58: #{tpu_custom_call.1} parent=5 // pred_check_branch
        %855 = sbr.rel (%p853) target = $region60
      $region59: #{tpu_custom_call.1} parent=5 // pred_region
        %s856 = ssub.s32 %s17, 2
        // Predicated region
        $region61: #{tpu_custom_call.1} parent=59 // pred_check
          %p857 = pneg %p114
        $region62: #{tpu_custom_call.1} parent=59 // pred_check_branch
          %859 = sbr.rel (%p857) target = $region64
        $region63: #{tpu_custom_call.1} parent=59 // pred_region
          %p860 = scmp.lt.s32.totalorder %s28, 1
          %s861 = scalar_select %p860, %s28, 1
          %s862 = smul.addr %s861, 4
          %s863 = scalar_lea.vmem %s2, %s862
        $region64: #{tpu_custom_call.1} parent=59 // pred_fallthru
          _
        // Predicated region
        $region65: #{tpu_custom_call.1} parent=59 // pred_check
          %p864 = pneg %p140
        $region66: #{tpu_custom_call.1} parent=59 // pred_check_branch
          %866 = sbr.rel (%p864) target = $region68
        $region67: #{tpu_custom_call.1} parent=59 // pred_region
          %p867 = scmp.lt.s32.totalorder %s28, 1
          %s868 = scalar_select %p867, %s28, 1
          %s869 = smul.addr %s868, 4
          %s870 = scalar_lea.vmem %s3, %s869
        $region68: #{tpu_custom_call.1} parent=59 // pred_fallthru
          _
        // Predicated region
        $region69: #{tpu_custom_call.1} parent=59 // pred_check
          %p871 = pneg %p166
        $region70: #{tpu_custom_call.1} parent=59 // pred_check_branch
          %873 = sbr.rel (%p871) target = $region72
        $region71: #{tpu_custom_call.1} parent=59 // pred_region
          %p874 = scmp.lt.s32.totalorder %s28, 1
          %s875 = scalar_select %p874, %s28, 1
          %s876 = smul.addr %s875, 4
          %s877 = scalar_lea.vmem %s4, %s876
        $region72: #{tpu_custom_call.1} parent=59 // pred_fallthru
          _
      $region60: #{tpu_custom_call.1} parent=5 // pred_fallthru
        _
    $region6: #{tpu_custom_call.1} parent=1 // loop_footer
      %s21 = sadd.s32 1, %s17
    $region7: #{tpu_custom_call.1} parent=1 // loop_footer_branch
      %16 = sbr.rel target = $region3
    $region8: #{tpu_custom_call.1} parent=1 // loop_exit
      _
    %878 = vsyncpa [#allocation3], 1
    %s879 = scalar_lea.sflag [#allocation3], 1
    %880 = vsyncpa %s879, 1
    %881 = vsyncpa [#allocation5], 1
    %s882 = scalar_lea.sflag [#allocation5], 1
    %883 = vsyncpa %s882, 1

</llo_original>
